<compile_context>
chip_gen: v7x
topology: tpu7x:2x2x1
jax: 0.10.0
libtpu: 0.0.40
codegen_flags: <defaults>
</compile_context>

<pallas_src>
import functools

import jax
import jax.numpy as jnp
import numpy as np
from jax.experimental import pallas as pl
from jax.experimental.pallas import tpu as pltpu

_NEG_INF = -1e30                  # finite "masked" score: avoids inf-inf NaNs in the softmax
_VMEM_LIMIT = 48 * 1024 * 1024    # headroom below v7x's 64 MiB physical VMEM; raises v5e/v6e default


def _layernorm(x, w, eps=1e-6):
    # matches torch.nn.functional.layer_norm (biased variance), bias=False; f32 math.
    mu = jnp.mean(x, axis=-1, keepdims=True)
    var = jnp.mean((x - mu) ** 2, axis=-1, keepdims=True)
    return (x - mu) * jax.lax.rsqrt(var + eps) * w


# --------------------------------------------------------------------------------------
# Call 1: LN1 + fused QKV projection
# --------------------------------------------------------------------------------------
def qkv_proj_kernel(x_ref, ln1w_ref, wqkv_ref, q_ref, k_ref, v_ref, *, dim, scale):
    # One (batch, L-tile) per grid step.
    x = x_ref[0].astype(jnp.float32)                              # (TL, D) f32 for LN
    h = _layernorm(x, ln1w_ref[...].astype(jnp.float32))          # (TL, D) f32
    # MXU operands in the weight dtype (bf16-capable), f32 accumulation.
    qkv = jnp.dot(h.astype(wqkv_ref.dtype), wqkv_ref[...],
                  preferred_element_type=jnp.float32)             # (TL, 3*D)
    # Fused column layout is [q | k | v]; fold the attention scale into Q here (O(L*D), not O(L^2)).
    q_ref[0] = (qkv[:, :dim] * scale).astype(q_ref.dtype)
    k_ref[0] = qkv[:, dim:2 * dim].astype(k_ref.dtype)
    v_ref[0] = qkv[:, 2 * dim:].astype(v_ref.dtype)


# --------------------------------------------------------------------------------------
# Call 2: attention (+optional mask) + out-proj + residual + LN2 + MLP + residual
# --------------------------------------------------------------------------------------
def _heads_leading(a, H, hd):
    # (T, D) -> (H, T, hd): head axis becomes a dot_general batch dim (single batched MXU contraction,
    # no per-head Python loop / slice / concat).
    T = a.shape[0]
    return jnp.transpose(a.reshape(T, H, hd), (1, 0, 2))


def _scores(q_ref, k_ref, mask_ref, H, hd):
    q3 = _heads_leading(q_ref[0], H, hd)                          # (H, TQ, hd), already 1/sqrt(hd)-scaled
    k3 = _heads_leading(k_ref[0], H, hd)                          # (H, TK, hd)
    s = jnp.einsum("hqd,hkd->hqk", q3, k3,
                   preferred_element_type=jnp.float32)            # (H, TQ, TK) f32
    if mask_ref is not None:
        keep = (mask_ref[0] != 0)[None, :, :]                     # (1, TQ, TK) bool
        s = jnp.where(keep, s, _NEG_INF)
    return s


def _epilogue(o, x_ref, wout_ref, ln2w_ref, wfc1_ref, wfc2_ref, o_ref, H, hd):
    # o: (H, TQ, hd) normalized attention output, f32.  Fold heads back, then out-proj + MLP.
    TQ = o.shape[1]
    o2 = jnp.transpose(o, (1, 0, 2)).reshape(TQ, H * hd)          # (TQ, D)
    attn_out = jnp.dot(o2.astype(wout_ref.dtype), wout_ref[...],
                       preferred_element_type=jnp.float32)        # (TQ, D)
    x_res = x_ref[0].astype(jnp.float32) + attn_out               # residual, f32
    h2 = _layernorm(x_res, ln2w_ref[...].astype(jnp.float32))
    h2 = jnp.dot(h2.astype(wfc1_ref.dtype), wfc1_ref[...],
                 preferred_element_type=jnp.float32)
    h2 = jax.nn.gelu(h2, approximate=False)                       # torch.nn.GELU() = exact erf GELU
    h2 = jnp.dot(h2.astype(wfc2_ref.dtype), wfc2_ref[...],
                 preferred_element_type=jnp.float32)
    o_ref[0] = (x_res + h2).astype(o_ref.dtype)


def attn_mlp_single_kernel(*refs, num_heads, head_dim, has_mask):
    # Whole KV range fits in one tile: plain (single-pass) softmax, no scratch, no init/finalize gating.
    if has_mask:
        (x_ref, q_ref, k_ref, v_ref, mask_ref,
         wout_ref, ln2w_ref, wfc1_ref, wfc2_ref, o_ref) = refs
    else:
        (x_ref, q_ref, k_ref, v_ref,
         wout_ref, ln2w_ref, wfc1_ref, wfc2_ref, o_ref) = refs
        mask_ref = None
    H, hd = num_heads, head_dim

    s = _scores(q_ref, k_ref, mask_ref, H, hd)                    # (H, TQ, L) f32
    v3 = _heads_leading(v_ref[0], H, hd)                          # (H, L, hd)
    m = s.max(axis=-1, keepdims=True)
    p = jnp.exp(s - m)
    l = p.sum(axis=-1, keepdims=True)
    pv = jnp.einsum("hqk,hkd->hqd", p.astype(v3.dtype), v3,
                    preferred_element_type=jnp.float32)           # (H, TQ, hd)
    o = pv * pl.reciprocal(l, approx=True)                        # EUP reciprocal: own VLIW slot
    _epilogue(o, x_ref, wout_ref, ln2w_ref, wfc1_ref, wfc2_ref, o_ref, H, hd)


def attn_mlp_flash_kernel(*refs, num_heads, head_dim, has_mask):
    # General case: online (flash) softmax over the KV grid axis; statistics in f32 scratch.
    if has_mask:
        (x_ref, q_ref, k_ref, v_ref, mask_ref,
         wout_ref, ln2w_ref, wfc1_ref, wfc2_ref,
         o_ref, m_scr, l_scr, acc_scr) = refs
    else:
        (x_ref, q_ref, k_ref, v_ref,
         wout_ref, ln2w_ref, wfc1_ref, wfc2_ref,
         o_ref, m_scr, l_scr, acc_scr) = refs
        mask_ref = None

    ki = pl.program_id(2)
    H, hd = num_heads, head_dim

    @pl.when(ki == 0)
    def _():
        m_scr[...] = jnp.full(m_scr.shape, -jnp.inf, m_scr.dtype)
        l_scr[...] = jnp.zeros(l_scr.shape, l_scr.dtype)
        acc_scr[...] = jnp.zeros(acc_scr.shape, acc_scr.dtype)

    s = _scores(q_ref, k_ref, mask_ref, H, hd)                    # (H, TQ, TK) f32
    v3 = _heads_leading(v_ref[0], H, hd)                          # (H, TK, hd)

    m_prev = m_scr[...]                                           # (H, TQ, 1)
    m_new = jnp.maximum(m_prev, s.max(axis=-1, keepdims=True))
    alpha = jnp.exp(m_prev - m_new)
    p = jnp.exp(s - m_new)                                        # (H, TQ, TK) f32
    l_scr[...] = alpha * l_scr[...] + p.sum(axis=-1, keepdims=True)
    pv = jnp.einsum("hqk,hkd->hqd", p.astype(v3.dtype), v3,
                    preferred_element_type=jnp.float32)           # (H, TQ, hd)
    acc_scr[...] = alpha * acc_scr[...] + pv
    m_scr[...] = m_new

    @pl.when(ki == pl.num_programs(2) - 1)
    def _():
        o = acc_scr[...] * pl.reciprocal(l_scr[...], approx=True)  # (H, TQ, hd) f32
        _epilogue(o, x_ref, wout_ref, ln2w_ref, wfc1_ref, wfc2_ref, o_ref, H, hd)


def _pick_tile(n, target):
    """Largest target-sized tile that divides n; fall back to the full extent (toy shapes)."""
    return target if n % target == 0 else n


def transformer_block(x, params, *, num_heads, head_dim, mask=None,
                      l_tile=256, q_tile=256, kv_tile=256):
    B, L, D = x.shape
    assert num_heads * head_dim == D, "Block requires dim == num_heads * head_dim"
    Dh = params["w_fc1"].shape[1]
    scale = head_dim ** (-0.5)
    TL = _pick_tile(L, l_tile)
    TQ = _pick_tile(L, q_tile)
    TK = _pick_tile(L, kv_tile)
    num_kv_tiles = L // TK

    # ---- call 1: LN1 + fused QKV projection (tiled over batch x sequence) ----
    q, k, v = pl.pallas_call(
        functools.partial(qkv_proj_kernel, dim=D, scale=scale),
        out_shape=tuple(jax.ShapeDtypeStruct((B, L, D), x.dtype) for _ in range(3)),
        grid=(B, L // TL),
        in_specs=[
            pl.BlockSpec((1, TL, D), lambda b, l: (b, l, 0)),       # x tile
            pl.BlockSpec((1, D), lambda b, l: (0, 0)),              # ln1 weight, stored (1, D)
            pl.BlockSpec((D, 3 * D), lambda b, l: (0, 0)),          # fused qkv weight (in, out)
        ],
        out_specs=tuple(pl.BlockSpec((1, TL, D), lambda b, l: (b, l, 0)) for _ in range(3)),
        compiler_params=pltpu.CompilerParams(
            dimension_semantics=("parallel", "parallel"),
            vmem_limit_bytes=_VMEM_LIMIT),
    )(x, params["ln1_w"], params["w_qkv"])

    # ---- call 2: attention (+optional mask) + out-proj + residual + MLP + residual ----
    has_mask = mask is not None
    # TODO(synk): a production kernel would stream a packed / block-sparse mask (splash-style)
    # instead of a dense (B, L, L) int32 mask.
    mask_i = mask.astype(jnp.int32) if has_mask else None

    if num_kv_tiles == 1:
        # -------- single-pass specialization: no scratch, no reduction grid axis --------
        inputs = [x, q, k, v]
        in_specs = [
            pl.BlockSpec((1, TQ, D), lambda b, qi: (b, qi, 0)),     # x (residual)
            pl.BlockSpec((1, TQ, D), lambda b, qi: (b, qi, 0)),     # q tile
            pl.BlockSpec((1, L, D), lambda b, qi: (b, 0, 0)),       # full K
            pl.BlockSpec((1, L, D), lambda b, qi: (b, 0, 0)),       # full V
        ]
        if has_mask:
            inputs.append(mask_i)
            in_specs.append(pl.BlockSpec((1, TQ, L), lambda b, qi: (b, qi, 0)))
        inputs += [params["w_out"], params["ln2_w"], params["w_fc1"], params["w_fc2"]]
        in_specs += [
            pl.BlockSpec((D, D), lambda b, qi: (0, 0)),             # attn out proj (in, out)
            pl.BlockSpec((1, D), lambda b, qi: (0, 0)),             # ln2 weight, stored (1, D)
            pl.BlockSpec((D, Dh), lambda b, qi: (0, 0)),            # mlp fc1 (in, out)
            pl.BlockSpec((Dh, D), lambda b, qi: (0, 0)),            # mlp fc2 (in, out)
        ]
        return pl.pallas_call(
            functools.partial(attn_mlp_single_kernel, num_heads=num_heads,
                              head_dim=head_dim, has_mask=has_mask),
            out_shape=jax.ShapeDtypeStruct((B, L, D), x.dtype),
            grid=(B, L // TQ),
            in_specs=in_specs,
            out_specs=pl.BlockSpec((1, TQ, D), lambda b, qi: (b, qi, 0)),
            compiler_params=pltpu.CompilerParams(
                dimension_semantics=("parallel", "parallel"),
                vmem_limit_bytes=_VMEM_LIMIT),
        )(*inputs)

    # -------- general flash path: online softmax over the KV axis (last grid axis) --------
    inputs = [x, q, k, v]
    in_specs = [
        pl.BlockSpec((1, TQ, D), lambda b, qi, ki: (b, qi, 0)),     # x (residual), constant over KV axis
        pl.BlockSpec((1, TQ, D), lambda b, qi, ki: (b, qi, 0)),     # q tile
        pl.BlockSpec((1, TK, D), lambda b, qi, ki: (b, ki, 0)),     # k tile
        pl.BlockSpec((1, TK, D), lambda b, qi, ki: (b, ki, 0)),     # v tile
    ]
    if has_mask:
        inputs.append(mask_i)
        in_specs.append(pl.BlockSpec((1, TQ, TK), lambda b, qi, ki: (b, qi, ki)))
    inputs += [params["w_out"], params["ln2_w"], params["w_fc1"], params["w_fc2"]]
    # Constant-index weight blocks: DMA'd once and revisited.  (On newer JAX they could additionally
    # be single-buffered via pipeline_mode=pl.Buffered(1) to halve weight VMEM on v7x.)
    in_specs += [
        pl.BlockSpec((D, D), lambda b, qi, ki: (0, 0)),             # attn out proj (in, out)
        pl.BlockSpec((1, D), lambda b, qi, ki: (0, 0)),             # ln2 weight, stored (1, D)
        pl.BlockSpec((D, Dh), lambda b, qi, ki: (0, 0)),            # mlp fc1 (in, out)
        pl.BlockSpec((Dh, D), lambda b, qi, ki: (0, 0)),            # mlp fc2 (in, out)
    ]

    return pl.pallas_call(
        functools.partial(attn_mlp_flash_kernel, num_heads=num_heads,
                          head_dim=head_dim, has_mask=has_mask),
        out_shape=jax.ShapeDtypeStruct((B, L, D), x.dtype),
        grid=(B, L // TQ, num_kv_tiles),                            # KV reduction axis last
        in_specs=in_specs,
        out_specs=pl.BlockSpec((1, TQ, D), lambda b, qi, ki: (b, qi, 0)),
        scratch_shapes=[
            pltpu.VMEM((num_heads, TQ, 1), jnp.float32),            # running max  m
            pltpu.VMEM((num_heads, TQ, 1), jnp.float32),            # running sum  l
            pltpu.VMEM((num_heads, TQ, head_dim), jnp.float32),     # output accumulator
        ],
        compiler_params=pltpu.CompilerParams(
            dimension_semantics=("parallel", "parallel", "arbitrary"),
            vmem_limit_bytes=_VMEM_LIMIT),
    )(*inputs)


# --------------------------------------------------------------------------------------
# Pure-JAX reference mirroring the PyTorch forward
# --------------------------------------------------------------------------------------
def reference_block(x, params, *, num_heads, head_dim, mask=None):
    B, L, D = x.shape
    H, hd = num_heads, head_dim
    scale = hd ** (-0.5)
    xf = x.astype(jnp.float32)
    p32 = {name: val.astype(jnp.float32) for name, val in params.items()}

    def ln(v, w):
        mu = jnp.mean(v, -1, keepdims=True)
        var = jnp.mean((v - mu) ** 2, -1, keepdims=True)
        return (v - mu) / jnp.sqrt(var + 1e-6) * w

    h = ln(xf, p32["ln1_w"][0])
    qkv = h @ p32["w_qkv"]
    qkv = qkv.reshape(B, L, 3, H, hd).transpose(2, 0, 3, 1, 4)
    q, k, v = qkv[0], qkv[1], qkv[2]
    attn = jnp.einsum("bhld,bhmd->bhlm", q, k) * scale
    if mask is not None:
        attn = jnp.where(mask[:, None, :, :], attn, -jnp.inf)
    attn = jax.nn.softmax(attn, axis=-1)
    o = jnp.einsum("bhlm,bhmd->bhld", attn, v)
    o = o.transpose(0, 2, 1, 3).reshape(B, L, D) @ p32["w_out"]
    xf = xf + o
    h2 = ln(xf, p32["ln2_w"][0])
    h2 = jax.nn.gelu(h2 @ p32["w_fc1"], approximate=False) @ p32["w_fc2"]
    return (xf + h2).astype(x.dtype)


if __name__ == "__main__":
    # TODO(synk): optional biases (use_bias=True variant) not wired in; module default (bias-free) is implemented.
    head_dim = 32
    mlp_ratio = 4.0

    def make_inputs(B, L, D, key):
        Dh = int(D * mlp_ratio)
        H = D // head_dim
        kx, k1, k2, k3, k4 = jax.random.split(key, 5)
        x = jax.random.normal(kx, (B, L, D), dtype=jnp.float32)
        params = {
            "ln1_w": jnp.ones((1, D), jnp.float32),
            "ln2_w": jnp.ones((1, D), jnp.float32),
            "w_qkv": 0.02 * jax.random.normal(k1, (D, 3 * H * head_dim), jnp.float32),
            "w_out": 0.02 * jax.random.normal(k2, (D, D), jnp.float32),
            "w_fc1": 0.02 * jax.random.normal(k3, (D, Dh), jnp.float32),
            "w_fc2": 0.02 * jax.random.normal(k4, (Dh, D), jnp.float32),
        }
        return x, params, H

    key = jax.random.PRNGKey(0)
    k_a, k_b = jax.random.split(key)

    # 1) no mask, f32 (single-pass attention path)
    B, L, D = 2, 8, 64
    x, params, H = make_inputs(B, L, D, k_a)
    out = jax.block_until_ready(
        transformer_block(x, params, num_heads=H, head_dim=head_dim))
    ref = reference_block(x, params, num_heads=H, head_dim=head_dim)
    np.testing.assert_allclose(np.asarray(out), np.asarray(ref), rtol=2e-3, atol=2e-4)

    # 2) causal boolean mask (exercises the masked_fill(-inf) path, single-pass)
    mask = jnp.broadcast_to(jnp.tril(jnp.ones((L, L), dtype=bool)), (B, L, L))
    out_m = jax.block_until_ready(
        transformer_block(x, params, num_heads=H, head_dim=head_dim, mask=mask))
    ref_m = reference_block(x, params, num_heads=H, head_dim=head_dim, mask=mask)
    np.testing.assert_allclose(np.asarray(out_m), np.asarray(ref_m), rtol=2e-3, atol=2e-4)

    # 3) bf16 weights/activations: MXU gets bf16 operands with f32 accumulation.
    x_bf = x.astype(jnp.bfloat16)
    params_bf = jax.tree_util.tree_map(lambda p: p.astype(jnp.bfloat16), params)
    out_bf = jax.block_until_ready(
        transformer_block(x_bf, params_bf, num_heads=H, head_dim=head_dim))
    ref_bf = reference_block(x_bf, params_bf, num_heads=H, head_dim=head_dim)
    np.testing.assert_allclose(np.asarray(jnp.asarray(out_bf, jnp.float32)),
                               np.asarray(jnp.asarray(ref_bf, jnp.float32)),
                               rtol=5e-2, atol=5e-2)

    # 4) multi-KV-tile flash path (online softmax over 2 KV tiles), f32, no mask
    B2, L2, D2 = 2, 16, 64
    x2, params2, H2 = make_inputs(B2, L2, D2, k_b)
    out2 = jax.block_until_ready(
        transformer_block(x2, params2, num_heads=H2, head_dim=head_dim,
                          l_tile=8, q_tile=8, kv_tile=8))
    ref2 = reference_block(x2, params2, num_heads=H2, head_dim=head_dim)
    np.testing.assert_allclose(np.asarray(out2), np.asarray(ref2), rtol=2e-3, atol=2e-4)

    print("KERNEL_OK")
</pallas_src>

<mosaic_0001>
module attributes {stable_mosaic.version = 11 : i64} {
  func.func @qkv_proj_kernel(%arg0: i32, %arg1: i32, %arg2: memref<1x8x64xf32, #tpu.memory_space<vmem>>, %arg3: memref<1x64xf32, #tpu.memory_space<vmem>>, %arg4: memref<64x192xf32, #tpu.memory_space<vmem>>, %arg5: memref<1x8x64xf32, #tpu.memory_space<vmem>>, %arg6: memref<1x8x64xf32, #tpu.memory_space<vmem>>, %arg7: memref<1x8x64xf32, #tpu.memory_space<vmem>>) attributes {dimension_semantics = [#tpu.dimension_semantics<parallel>, #tpu.dimension_semantics<parallel>], iteration_bounds = array<i64: 2, 1>, scalar_prefetch = 0 : i64, scratch_operands = 0 : i64, tpu.core_type = #tpu.core_type<tc>, window_params = [{transform_indices = @transform_0, window_bounds = array<i64: 1, 8, 64>}, {pipeline_mode = #tpu.pipeline_mode<synchronous>, transform_indices = @transform_1, window_bounds = array<i64: 1, 64>}, {pipeline_mode = #tpu.pipeline_mode<synchronous>, transform_indices = @transform_2, window_bounds = array<i64: 64, 192>}, {transform_indices = @transform_3, window_bounds = array<i64: 1, 8, 64>}, {transform_indices = @transform_4, window_bounds = array<i64: 1, 8, 64>}, {transform_indices = @transform_5, window_bounds = array<i64: 1, 8, 64>}]} {
    %c0 = arith.constant 0 : index
    %c0_0 = arith.constant 0 : index
    %c0_1 = arith.constant 0 : index
    %0 = vector.load %arg2[%c0, %c0_0, %c0_1] : memref<1x8x64xf32, #tpu.memory_space<vmem>>, vector<1x8x64xf32>
    %1 = vector.shape_cast %0 : vector<1x8x64xf32> to vector<8x64xf32>
    %c0_2 = arith.constant 0 : index
    %c0_3 = arith.constant 0 : index
    %2 = vector.load %arg3[%c0_2, %c0_3] : memref<1x64xf32, #tpu.memory_space<vmem>>, vector<1x64xf32>
    %cst = arith.constant dense<0.000000e+00> : vector<8xf32>
    %3 = vector.multi_reduction <add>, %1, %cst [1] : vector<8x64xf32> to vector<8xf32>
    %4 = vector.shape_cast %3 : vector<8xf32> to vector<8x1xf32>
    %cst_4 = arith.constant 6.400000e+01 : f32
    %5 = vector.broadcast %cst_4 : f32 to vector<8x1xf32>
    %6 = arith.divf %4, %5 : vector<8x1xf32>
    %7 = vector.broadcast %6 : vector<8x1xf32> to vector<8x64xf32>
    %8 = arith.subf %1, %7 : vector<8x64xf32>
    %9 = arith.mulf %8, %8 : vector<8x64xf32>
    %cst_5 = arith.constant dense<0.000000e+00> : vector<8xf32>
    %10 = vector.multi_reduction <add>, %9, %cst_5 [1] : vector<8x64xf32> to vector<8xf32>
    %11 = vector.shape_cast %10 : vector<8xf32> to vector<8x1xf32>
    %cst_6 = arith.constant 6.400000e+01 : f32
    %12 = vector.broadcast %cst_6 : f32 to vector<8x1xf32>
    %13 = arith.divf %11, %12 : vector<8x1xf32>
    %14 = vector.broadcast %6 : vector<8x1xf32> to vector<8x64xf32>
    %15 = arith.subf %1, %14 : vector<8x64xf32>
    %cst_7 = arith.constant 9.99999997E-7 : f32
    %16 = vector.broadcast %cst_7 : f32 to vector<8x1xf32>
    %17 = arith.addf %13, %16 : vector<8x1xf32>
    %18 = math.rsqrt %17 : vector<8x1xf32>
    %19 = vector.broadcast %18 : vector<8x1xf32> to vector<8x64xf32>
    %20 = arith.mulf %15, %19 : vector<8x64xf32>
    %21 = vector.broadcast %2 : vector<1x64xf32> to vector<8x64xf32>
    %22 = arith.mulf %20, %21 : vector<8x64xf32>
    %c0_8 = arith.constant 0 : index
    %c0_9 = arith.constant 0 : index
    %23 = vector.load %arg4[%c0_8, %c0_9] : memref<64x192xf32, #tpu.memory_space<vmem>>, vector<64x192xf32>
    %cst_10 = arith.constant dense<0.000000e+00> : vector<8x192xf32>
    %24 = tpu.matmul %22, %23, %cst_10 {dimension_numbers = #tpu.dot_dimension_numbers<[1], [0], [0], [1], [0, 0, 1, 1], [], []>} : vector<8x64xf32>, vector<64x192xf32>, vector<8x192xf32> -> vector<8x192xf32>
    %25 = vector.extract_strided_slice %24 {offsets = [0, 0], sizes = [8, 64], strides = [1, 1]} : vector<8x192xf32> to vector<8x64xf32>
    %cst_11 = arith.constant 0.176776692 : f32
    %26 = vector.broadcast %cst_11 : f32 to vector<8x64xf32>
    %27 = arith.mulf %25, %26 : vector<8x64xf32>
    %c0_12 = arith.constant 0 : index
    %c0_13 = arith.constant 0 : index
    %c0_14 = arith.constant 0 : index
    %28 = vector.load %arg5[%c0_12, %c0_13, %c0_14] : memref<1x8x64xf32, #tpu.memory_space<vmem>>, vector<1x8x64xf32>
    %29 = vector.shape_cast %28 : vector<1x8x64xf32> to vector<8x64xf32>
    %30 = vector.shape_cast %27 : vector<8x64xf32> to vector<1x8x64xf32>
    tpu.vector_store %arg5[%c0_12, %c0_13, %c0_14], %30 {strides = array<i32>} : memref<1x8x64xf32, #tpu.memory_space<vmem>>, vector<1x8x64xf32>,
    %31 = vector.extract_strided_slice %24 {offsets = [0, 64], sizes = [8, 64], strides = [1, 1]} : vector<8x192xf32> to vector<8x64xf32>
    %c0_15 = arith.constant 0 : index
    %c0_16 = arith.constant 0 : index
    %c0_17 = arith.constant 0 : index
    %32 = vector.load %arg6[%c0_15, %c0_16, %c0_17] : memref<1x8x64xf32, #tpu.memory_space<vmem>>, vector<1x8x64xf32>
    %33 = vector.shape_cast %32 : vector<1x8x64xf32> to vector<8x64xf32>
    %34 = vector.shape_cast %31 : vector<8x64xf32> to vector<1x8x64xf32>
    tpu.vector_store %arg6[%c0_15, %c0_16, %c0_17], %34 {strides = array<i32>} : memref<1x8x64xf32, #tpu.memory_space<vmem>>, vector<1x8x64xf32>,
    %35 = vector.extract_strided_slice %24 {offsets = [0, 128], sizes = [8, 64], strides = [1, 1]} : vector<8x192xf32> to vector<8x64xf32>
    %c0_18 = arith.constant 0 : index
    %c0_19 = arith.constant 0 : index
    %c0_20 = arith.constant 0 : index
    %36 = vector.load %arg7[%c0_18, %c0_19, %c0_20] : memref<1x8x64xf32, #tpu.memory_space<vmem>>, vector<1x8x64xf32>
    %37 = vector.shape_cast %36 : vector<1x8x64xf32> to vector<8x64xf32>
    %38 = vector.shape_cast %35 : vector<8x64xf32> to vector<1x8x64xf32>
    tpu.vector_store %arg7[%c0_18, %c0_19, %c0_20], %38 {strides = array<i32>} : memref<1x8x64xf32, #tpu.memory_space<vmem>>, vector<1x8x64xf32>,
    return
  }
  func.func @transform_0(%arg0: i32, %arg1: i32) -> (i32, i32, i32) {
    %c0_i32 = arith.constant 0 : i32
    %c0_i32_0 = arith.constant 0 : i32
    return %arg0, %arg1, %c0_i32 : i32, i32, i32
  }
  func.func @transform_1(%arg0: i32, %arg1: i32) -> (i32, i32) {
    %c0_i32 = arith.constant 0 : i32
    %c0_i32_0 = arith.constant 0 : i32
    %c0_i32_1 = arith.constant 0 : i32
    return %c0_i32, %c0_i32_0 : i32, i32
  }
  func.func @transform_2(%arg0: i32, %arg1: i32) -> (i32, i32) {
    %c0_i32 = arith.constant 0 : i32
    %c0_i32_0 = arith.constant 0 : i32
    %c0_i32_1 = arith.constant 0 : i32
    return %c0_i32, %c0_i32_0 : i32, i32
  }
  func.func @transform_3(%arg0: i32, %arg1: i32) -> (i32, i32, i32) {
    %c0_i32 = arith.constant 0 : i32
    %c0_i32_0 = arith.constant 0 : i32
    return %arg0, %arg1, %c0_i32 : i32, i32, i32
  }
  func.func @transform_4(%arg0: i32, %arg1: i32) -> (i32, i32, i32) {
    %c0_i32 = arith.constant 0 : i32
    %c0_i32_0 = arith.constant 0 : i32
    return %arg0, %arg1, %c0_i32 : i32, i32, i32
  }
  func.func @transform_5(%arg0: i32, %arg1: i32) -> (i32, i32, i32) {
    %c0_i32 = arith.constant 0 : i32
    %c0_i32_0 = arith.constant 0 : i32
    return %arg0, %arg1, %c0_i32 : i32, i32, i32
  }
}

</mosaic_0001>

<llo_original>
// kernel: tpu_custom_call.1
$region0: #{tpu_custom_call.1}
  #allocation0 [shape = 'u32[]', space=smem, size = 0x4, offset = 0x4, fixed_abs, tag = 'smem constant byte address 0x4 - core index']
  #allocation1 [shape = 'u32[144,128]{1,0:T(1,128)}', space=vmem, size = 0x12000, scoped, tag = 'internal scratch']
  %s0 = inlined_call_operand.hbm [shape: f32[2,8,64], index: 0, kind: input, shape index: {}]
  %s1 = inlined_call_operand.vmem [shape: f32[1,64], index: 1, kind: input, shape index: {}]
  %s2 = inlined_call_operand.hbm [shape: f32[64,192], index: 2, kind: input, shape index: {}]
  %s3 = inlined_call_operand.hbm [shape: f32[2,8,64], index: 3, kind: output, shape index: {0}]
  %s4 = inlined_call_operand.hbm [shape: f32[2,8,64], index: 4, kind: output, shape index: {1}]
  %s5 = inlined_call_operand.hbm [shape: f32[2,8,64], index: 5, kind: output, shape index: {2}]
  %6 = xla_tuple %s3, %s4, %s5
  %s7 = sld [smem:[#allocation0]]
  $region69: #{tpu_custom_call.1} parent=0
    _
  %s9 = ssub.s32 1, %s7
  %s10 = scalar_select 0, %s9, %s7
  $region1: #{tpu_custom_call.1} parent=0
    #allocation2 [shape = 'u8[8192]{0}', space=vmem, size = 0x2000, scoped, tag = 'input window, operand 0']
    #allocation3 [shape = 's32[2]{0}', space=sflag, size = 0x8, scoped, tag = 'scoped memory for tpu_custom_call.1']
    #allocation4 [shape = 's32[2]{0}', space=sflag, size = 0x8, scoped, tag = 'scoped memory for tpu_custom_call.1']
    #allocation5 [shape = 'u8[65536]{0}', space=vmem, size = 0x10000, scoped, tag = 'input window, operand 2, single buffered']
    #allocation6 [shape = 's32[1]{0}', space=sflag, size = 0x4, scoped, tag = 'scoped memory for tpu_custom_call.1']
    #allocation7 [shape = 'u8[8192]{0}', space=vmem, size = 0x2000, scoped, tag = 'output window, operand 0']
    #allocation8 [shape = 'u8[8192]{0}', space=vmem, size = 0x2000, scoped, tag = 'output window, operand 1']
    #allocation9 [shape = 's32[2]{0}', space=sflag, size = 0x8, scoped, tag = 'scoped memory for tpu_custom_call.1']
    #allocation10 [shape = 'u8[8192]{0}', space=vmem, size = 0x2000, scoped, tag = 'output window, operand 2']
    %11 = vsyncpa [#allocation3], 0
    %s12 = scalar_lea.sflag [#allocation3], 1
    %13 = vsyncpa %s12, 0
    %14 = vsyncpa [#allocation6], 0
    %15 = vsyncpa [#allocation4], 0
    %s16 = scalar_lea.sflag [#allocation4], 1
    %17 = vsyncpa %s16, 0
    %18 = vsyncpa [#allocation9], 0
    %s19 = scalar_lea.sflag [#allocation9], 1
    %20 = vsyncpa %s19, 0
    loop: start=0, step=1, limit=4
    $region2: #{tpu_custom_call.1} parent=1 // loop_pre_header
      _
    $region3: #{tpu_custom_call.1} parent=1 // loop_header
      %s22 = sphi 0, %s26
      %p23 = scmp.ge.s32.totalorder %s22, 4
      %s29 = sphi 0, %s41
      %s30 = sphi 0, %s37
      %s31 = sphi 0, %s29
      %s32 = sphi 0, %s30
      %s33 = sphi 0, %s31
      %s34 = sphi 0, %s32
      %s46 = sphi 0, %s48
      %s49 = sphi 0, %s46
      %s50 = sphi 0, %s49
      %s66 = sphi 0, %s50
      %s70 = sphi 0, %s70
      %s72 = sphi 0, %s70
      %s73 = sphi 0, %s72
      %s87 = sphi 0, %s73
      %s91 = sphi 0, %s91
      %s93 = sphi 0, %s91
      %s94 = sphi 0, %s93
      %s108 = sphi 0, %s94
      %s116 = sphi 0, %s118
      %s119 = sphi 0, %s116
      %s120 = sphi 0, %s119
      %s136 = sphi 0, %s120
      %s144 = sphi 0, %s146
      %s147 = sphi 0, %s144
      %s148 = sphi 0, %s147
      %s164 = sphi 0, %s148
      %s172 = sphi 0, %s174
      %s175 = sphi 0, %s172
      %s176 = sphi 0, %s175
      %s192 = sphi 0, %s176
    $region4: #{tpu_custom_call.1} parent=1 // loop_header_branch
      %25 = sbr.rel (%p23) target = $region8
    $region5: #{tpu_custom_call.1} parent=1 // loop_body
      %s27 = ssub.s32 %s22, 1
      %s28 = ssub.s32 %s22, 2
      %s35 = sadd.s32 1, %s30
      %p36 = scmp.ge.s32.totalorder %s35, 1
      %s37 = scalar_select %p36, 0, %s35
      %s38 = sadd.s32 1, %s29
      %s39 = scalar_select %p36, %s38, %s29
      %p40 = scmp.ge.s32.totalorder %s39, 2
      %s41 = scalar_select %p40, 0, %s39
      %s42 = ssub.s32 %s29, %s41
      %s43 = ssub.s32 %s30, %s37
      %s44 = sor.u32 %s42, %s43
      %p45 = scmp.eq.s32.totalorder %s44, 0
      %s47 = sadd.s32 %s46, 1
      %s48 = scalar_select %p45, %s46, %s47
      %p51 = pneg %p45
      %p52 = scmp.eq.s32.totalorder %s22, 1
      %p53 = por %p51, %p52
      %p54 = scmp.ne.s32.totalorder %s46, %s49
      %p55 = scmp.eq.s32.totalorder %s22, 0
      %p56 = por %p54, %p55
      %p57 = scmp.ne.s32.totalorder %s46, %s49
      %p58 = scmp.eq.s32.totalorder %s27, 1
      %p59 = por %p57, %p58
      %p60 = scmp.ne.s32.totalorder %s49, %s50
      %p61 = scmp.eq.s32.totalorder %s27, 0
      %p62 = por %p60, %p61
      %p63 = scmp.ne.s32.totalorder %s49, %s50
      %p64 = scmp.eq.s32.totalorder %s28, 1
      %p65 = por %p63, %p64
      %p67 = scmp.ne.s32.totalorder %s50, %s66
      %p68 = scmp.eq.s32.totalorder %s28, 0
      %p69 = por %p67, %p68
      %s71 = sadd.s32 %s70, 1
      %p74 = scmp.eq.s32.totalorder %s22, 1
      %p75 = scmp.ne.s32.totalorder %s70, %s72
      %p76 = scmp.eq.s32.totalorder %s22, 0
      %p77 = por %p75, %p76
      %p78 = scmp.ne.s32.totalorder %s70, %s72
      %p79 = scmp.eq.s32.totalorder %s27, 1
      %p80 = por %p78, %p79
      %p81 = scmp.ne.s32.totalorder %s72, %s73
      %p82 = scmp.eq.s32.totalorder %s27, 0
      %p83 = por %p81, %p82
      %p84 = scmp.ne.s32.totalorder %s72, %s73
      %p85 = scmp.eq.s32.totalorder %s28, 1
      %p86 = por %p84, %p85
      %p88 = scmp.ne.s32.totalorder %s73, %s87
      %p89 = scmp.eq.s32.totalorder %s28, 0
      %p90 = por %p88, %p89
      %s92 = sadd.s32 %s91, 1
      %p95 = scmp.eq.s32.totalorder %s22, 1
      %p96 = scmp.ne.s32.totalorder %s91, %s93
      %p97 = scmp.eq.s32.totalorder %s22, 0
      %p98 = por %p96, %p97
      %p99 = scmp.ne.s32.totalorder %s91, %s93
      %p100 = scmp.eq.s32.totalorder %s27, 1
      %p101 = por %p99, %p100
      %p102 = scmp.ne.s32.totalorder %s93, %s94
      %p103 = scmp.eq.s32.totalorder %s27, 0
      %p104 = por %p102, %p103
      %p105 = scmp.ne.s32.totalorder %s93, %s94
      %p106 = scmp.eq.s32.totalorder %s28, 1
      %p107 = por %p105, %p106
      %p109 = scmp.ne.s32.totalorder %s94, %s108
      %p110 = scmp.eq.s32.totalorder %s28, 0
      %p111 = por %p109, %p110
      %s112 = ssub.s32 %s29, %s41
      %s113 = ssub.s32 %s30, %s37
      %s114 = sor.u32 %s112, %s113
      %p115 = scmp.eq.s32.totalorder %s114, 0
      %s117 = sadd.s32 %s116, 1
      %s118 = scalar_select %p115, %s116, %s117
      %p121 = pneg %p115
      %p122 = scmp.eq.s32.totalorder %s22, 1
      %p123 = por %p121, %p122
      %p124 = scmp.ne.s32.totalorder %s116, %s119
      %p125 = scmp.eq.s32.totalorder %s22, 0
      %p126 = por %p124, %p125
      %p127 = scmp.ne.s32.totalorder %s116, %s119
      %p128 = scmp.eq.s32.totalorder %s27, 1
      %p129 = por %p127, %p128
      %p130 = scmp.ne.s32.totalorder %s119, %s120
      %p131 = scmp.eq.s32.totalorder %s27, 0
      %p132 = por %p130, %p131
      %p133 = scmp.ne.s32.totalorder %s119, %s120
      %p134 = scmp.eq.s32.totalorder %s28, 1
      %p135 = por %p133, %p134
      %p137 = scmp.ne.s32.totalorder %s120, %s136
      %p138 = scmp.eq.s32.totalorder %s28, 0
      %p139 = por %p137, %p138
      %s140 = ssub.s32 %s29, %s41
      %s141 = ssub.s32 %s30, %s37
      %s142 = sor.u32 %s140, %s141
      %p143 = scmp.eq.s32.totalorder %s142, 0
      %s145 = sadd.s32 %s144, 1
      %s146 = scalar_select %p143, %s144, %s145
      %p149 = pneg %p143
      %p150 = scmp.eq.s32.totalorder %s22, 1
      %p151 = por %p149, %p150
      %p152 = scmp.ne.s32.totalorder %s144, %s147
      %p153 = scmp.eq.s32.totalorder %s22, 0
      %p154 = por %p152, %p153
      %p155 = scmp.ne.s32.totalorder %s144, %s147
      %p156 = scmp.eq.s32.totalorder %s27, 1
      %p157 = por %p155, %p156
      %p158 = scmp.ne.s32.totalorder %s147, %s148
      %p159 = scmp.eq.s32.totalorder %s27, 0
      %p160 = por %p158, %p159
      %p161 = scmp.ne.s32.totalorder %s147, %s148
      %p162 = scmp.eq.s32.totalorder %s28, 1
      %p163 = por %p161, %p162
      %p165 = scmp.ne.s32.totalorder %s148, %s164
      %p166 = scmp.eq.s32.totalorder %s28, 0
      %p167 = por %p165, %p166
      %s168 = ssub.s32 %s29, %s41
      %s169 = ssub.s32 %s30, %s37
      %s170 = sor.u32 %s168, %s169
      %p171 = scmp.eq.s32.totalorder %s170, 0
      %s173 = sadd.s32 %s172, 1
      %s174 = scalar_select %p171, %s172, %s173
      %p177 = pneg %p171
      %p178 = scmp.eq.s32.totalorder %s22, 1
      %p179 = por %p177, %p178
      %p180 = scmp.ne.s32.totalorder %s172, %s175
      %p181 = scmp.eq.s32.totalorder %s22, 0
      %p182 = por %p180, %p181
      %p183 = scmp.ne.s32.totalorder %s172, %s175
      %p184 = scmp.eq.s32.totalorder %s27, 1
      %p185 = por %p183, %p184
      %p186 = scmp.ne.s32.totalorder %s175, %s176
      %p187 = scmp.eq.s32.totalorder %s27, 0
      %p188 = por %p186, %p187
      %p189 = scmp.ne.s32.totalorder %s175, %s176
      %p190 = scmp.eq.s32.totalorder %s28, 1
      %p191 = por %p189, %p190
      %p193 = scmp.ne.s32.totalorder %s176, %s192
      %p194 = scmp.eq.s32.totalorder %s28, 0
      %p195 = por %p193, %p194
      %p196 = scmp.le.s32.totalorder 1, %s22
      %p197 = scmp.lt.s32.totalorder %s22, 3
      %p198 = pnand %p196, %p197
      %p199 = pneg %p198
      // Predicated region
      $region9: #{tpu_custom_call.1} parent=5 // pred_check
        _
      $region10: #{tpu_custom_call.1} parent=5 // pred_check_branch
        %201 = sbr.rel (%p198) target = $region12
      $region11: #{tpu_custom_call.1} parent=5 // pred_region
        %s202 = ssub.s32 %s22, 1
        // Predicated region
        $region13: #{tpu_custom_call.1} parent=11 // pred_check
          %p203 = pneg %p83
        $region14: #{tpu_custom_call.1} parent=11 // pred_check_branch
          %205 = sbr.rel (%p203) target = $region16
        $region15: #{tpu_custom_call.1} parent=11 // pred_region
          _
        $region16: #{tpu_custom_call.1} parent=11 // pred_fallthru
          _
        // Predicated region
        $region17: #{tpu_custom_call.1} parent=11 // pred_check
          %p206 = pneg %p104
        $region18: #{tpu_custom_call.1} parent=11 // pred_check_branch
          %208 = sbr.rel (%p206) target = $region20
        $region19: #{tpu_custom_call.1} parent=11 // pred_region
          %s210 = ssub.s32 2048, 2048
          %211 = vsyncadd [#allocation6], %s210
          %s212 = sshll.u32 [#allocation5], 4
          %s213 = int_to_ptr.vmem [resolvable:$true] %s212
          %218 = dma.hbm_to_vmem [thread:$0]  %s2, 2048, %s213, [#allocation6], 256, 256, 16
        $region20: #{tpu_custom_call.1} parent=11 // pred_fallthru
          _
      $region12: #{tpu_custom_call.1} parent=5 // pred_fallthru
        _
      %p219 = scmp.lt.s32.totalorder %s22, 2
      // Predicated region
      $region21: #{tpu_custom_call.1} parent=5 // pred_check
        %p220 = pneg %p219
      $region22: #{tpu_custom_call.1} parent=5 // pred_check_branch
        %222 = sbr.rel (%p220) target = $region24
      $region23: #{tpu_custom_call.1} parent=5 // pred_region
        // Predicated region
        $region25: #{tpu_custom_call.1} parent=23 // pred_check
          %p223 = pneg %p56
        $region26: #{tpu_custom_call.1} parent=23 // pred_check_branch
          %225 = sbr.rel (%p223) target = $region28
        $region27: #{tpu_custom_call.1} parent=23 // pred_region
          %s226 = sand.u32 %s46, 1
          %s227 = scalar_lea.sflag [#allocation3], %s226
          %s228 = sand.u32 %s46, 1
          %s229 = smul.addr %s228, 8
          %s230 = scalar_lea.vmem [#allocation2], %s229
          %s232 = ssub.s32 128, 128
          %233 = vsyncadd %s227, %s232
          %s234 = sadd.s32 %s30, %s29
          %s235 = smul.addr %s234, 128
          %s236 = scalar_lea.hbm %s0, %s235
          %s238 = sshll.u32 %s230, 4
          %s239 = int_to_ptr.vmem [resolvable:$true] %s238
          %241 = dma.hbm_to_vmem [thread:$0]  %s236, 128, %s239, %s227
        $region28: #{tpu_custom_call.1} parent=23 // pred_fallthru
          _
      $region24: #{tpu_custom_call.1} parent=5 // pred_fallthru
        _
      %p242 = scmp.le.s32.totalorder 1, %s22
      %p243 = scmp.lt.s32.totalorder %s22, 3
      %p244 = pnand %p242, %p243
      %p245 = pneg %p244
      // Predicated region
      $region29: #{tpu_custom_call.1} parent=5 // pred_check
        _
      $region30: #{tpu_custom_call.1} parent=5 // pred_check_branch
        %247 = sbr.rel (%p244) target = $region32
      $region31: #{tpu_custom_call.1} parent=5 // pred_region
        %s248 = ssub.s32 %s22, 1
        %s249 = sand.u32 %s49, 1
        %s250 = scalar_lea.sflag [#allocation3], %s249
        %s251 = sand.u32 %s49, 1
        %s252 = smul.addr %s251, 8
        %s253 = scalar_lea.vmem [#allocation2], %s252
        // Predicated region
        $region33: #{tpu_custom_call.1} parent=31 // pred_check
          %p254 = pneg %p62
        $region34: #{tpu_custom_call.1} parent=31 // pred_check_branch
          %256 = sbr.rel (%p254) target = $region36
        $region35: #{tpu_custom_call.1} parent=31 // pred_region
          %257 = dma.done %s250, 128
        $region36: #{tpu_custom_call.1} parent=31 // pred_fallthru
          _
        // Predicated region
        $region37: #{tpu_custom_call.1} parent=31 // pred_check
          %p258 = pneg %p104
        $region38: #{tpu_custom_call.1} parent=31 // pred_check_branch
          %260 = sbr.rel (%p258) target = $region40
        $region39: #{tpu_custom_call.1} parent=31 // pred_region
          %261 = dma.done [#allocation6], 2048
        $region40: #{tpu_custom_call.1} parent=31 // pred_fallthru
          _
        %s262 = sand.u32 %s49, 1
        %s263 = scalar_lea.sflag [#allocation3], %s262
        %s264 = sand.u32 %s49, 1
        %s265 = smul.addr %s264, 8
        %s266 = scalar_lea.vmem [#allocation2], %s265
        %p267 = pneg %p62
        %p268 = pneg %p59
        %p269 = pneg %p83
        %p270 = pneg %p80
        %p271 = pneg %p104
        %p272 = pneg %p101
        %p273 = pneg %p132
        %p274 = pneg %p129
        %s275 = sand.u32 %s119, 1
        %s276 = scalar_lea.sflag [#allocation4], %s275
        %s277 = sand.u32 %s119, 1
        %s278 = smul.addr %s277, 8
        %s279 = scalar_lea.vmem [#allocation7], %s278
        %p280 = pneg %p160
        %p281 = pneg %p157
        %s282 = sand.u32 %s27, 1
        %s283 = scalar_lea.sflag [#allocation9], %s282
        %s284 = sand.u32 %s147, 1
        %s285 = smul.addr %s284, 8
        %s286 = scalar_lea.vmem [#allocation8], %s285
        %p287 = pneg %p188
        %p288 = pneg %p185
        %s289 = sand.u32 %s27, 1
        %s290 = scalar_lea.sflag [#allocation9], %s289
        %s291 = sand.u32 %s175, 1
        %s292 = smul.addr %s291, 8
        %s293 = scalar_lea.vmem [#allocation10], %s292
        %v294 = vld [vmem:[%s253] sm:$0xff]
        %v295 = vld [vmem:[%s1] sm:$0x1]
        %vm296 = vcmask 523264
        %v297 = vsel %vm296, %v294, 0.0
        %298 = vadd.xlane.f32.xlu0 %v297
        %v299 = vpop.xlane.xlu0 %298
        %v300 = vrcp.pop 64.0
        %v301 = vmul.f32 %v299, %v300
        %v302 = vsub.f32 %v294, %v301
        %v303 = vmul.f32 %v302, %v302
        %v304 = vsel %vm296, %v303, 0.0
        %305 = vadd.xlane.f32.xlu0 %v304
        %v306 = vpop.xlane.xlu0 %305
        %v307 = vmul.f32 %v306, %v300
        %v308 = vadd.f32 %v307, 1e-06
        %v309 = vrsqrt.pop %v308
        %v310 = vmul.f32 %v302, %v309
        %v312 = vlaneseq
        %v313 = vshrl.u32 %v312, 7
        %v314 = vsub.s32 0, %v313
        %v315 = vrot.slane %v295, %v314
        %v317 = vmul.f32 %v310, %v315
        %v318 = vld [vmem:[#allocation5] sm:$0xff]
        %v319 = vld [vmem:[#allocation5 + $0x8] sm:$0xff]
        %v320 = vld [vmem:[#allocation5 + $0x10] sm:$0xff]
        %v321 = vld [vmem:[#allocation5 + $0x18] sm:$0xff]
        %v322 = vld [vmem:[#allocation5 + $0x20] sm:$0xff]
        %v323 = vld [vmem:[#allocation5 + $0x28] sm:$0xff]
        %v324 = vld [vmem:[#allocation5 + $0x30] sm:$0xff]
        %v325 = vld [vmem:[#allocation5 + $0x38] sm:$0xff]
        %v326 = vld [vmem:[#allocation5 + $0x40] sm:$0xff]
        %v327 = vld [vmem:[#allocation5 + $0x48] sm:$0xff]
        %v328 = vld [vmem:[#allocation5 + $0x50] sm:$0xff]
        %v329 = vld [vmem:[#allocation5 + $0x58] sm:$0xff]
        %v330 = vld [vmem:[#allocation5 + $0x60] sm:$0xff]
        %v331 = vld [vmem:[#allocation5 + $0x68] sm:$0xff]
        %v332 = vld [vmem:[#allocation5 + $0x70] sm:$0xff]
        %v333 = vld [vmem:[#allocation5 + $0x78] sm:$0xff]
        %v335 = vsel %vm296, %v317, 0
        %337 = vmatprep.subr.mxu0 %v319
        %338 = vmatpush1.msra.mxu0 %v318
        %339 = vmatprep.subr.mxu0 %v321
        %340 = vmatpush1.msra.mxu0 %v320
        %341 = vmatprep.subr.mxu0 %v323
        %342 = vmatpush1.msra.mxu0 %v322
        %343 = vmatprep.subr.mxu0 %v325
        %344 = vmatpush1.msra.mxu0 %v324
        %345 = vmatprep.subr.mxu0 %v327
        %346 = vmatpush1.msra.mxu0 %v326
        %347 = vmatprep.subr.mxu0 %v329
        %348 = vmatpush1.msra.mxu0 %v328
        %349 = vmatprep.subr.mxu0 %v331
        %350 = vmatpush1.msra.mxu0 %v330
        %351 = vmatprep.subr.mxu0 %v333
        %352 = vmatpush1.msra.mxu0 %v332
        %353 = vmatprep.subr.mxu0 0.0
        %354 = vmatpush1.msra.mxu0 0.0
        %355 = vmatprep.subr.mxu0 0.0
        %356 = vmatpush1.msra.mxu0 0.0
        %357 = vmatprep.subr.mxu0 0.0
        %358 = vmatpush1.msra.mxu0 0.0
        %359 = vmatprep.subr.mxu0 0.0
        %360 = vmatpush1.msra.mxu0 0.0
        %361 = vmatprep.subr.mxu0 0.0
        %362 = vmatpush1.msra.mxu0 0.0
        %363 = vmatprep.subr.mxu0 0.0
        %364 = vmatpush1.msra.mxu0 0.0
        %365 = vmatprep.subr.mxu0 0.0
        %366 = vmatpush1.msra.mxu0 0.0
        %367 = vmatprep.subr.mxu0 0.0
        %368 = vmatpush1.msra.mxu0 0.0
        %369 = vmatprep.subr.mxu0 0.0
        %370 = vmatpush1.msra.mxu0 0.0
        %371 = vmatprep.subr.mxu0 0.0
        %372 = vmatpush1.msra.mxu0 0.0
        %373 = vmatprep.subr.mxu0 0.0
        %374 = vmatpush1.msra.mxu0 0.0
        %375 = vmatprep.subr.mxu0 0.0
        %376 = vmatpush1.msra.mxu0 0.0
        %377 = vmatprep.subr.mxu0 0.0
        %378 = vmatpush1.msra.mxu0 0.0
        %379 = vmatprep.subr.mxu0 0.0
        %380 = vmatpush1.msra.mxu0 0.0
        %381 = vmatprep.subr.mxu0 0.0
        %382 = vmatpush1.msra.mxu0 0.0
        %383 = vmatprep.subr.mxu0 0.0
        %384 = vmatpush1.msra.mxu0 0.0
        %385 = vmatprep.subr.mxu0 0.0
        %386 = vmatpush1.msra.mxu0 0.0
        %387 = vmatprep.subr.mxu0 0.0
        %388 = vmatpush1.msra.mxu0 0.0
        %389 = vmatprep.subr.mxu0 0.0
        %390 = vmatpush1.msra.mxu0 0.0
        %391 = vmatprep.subr.mxu0 0.0
        %392 = vmatpush1.msra.mxu0 0.0
        %393 = vmatprep.subr.mxu0 0.0
        %394 = vmatpush1.msra.mxu0 0.0
        %395 = vmatprep.subr.mxu0 0.0
        %396 = vmatpush1.msra.mxu0 0.0
        %397 = vmatprep.subr.mxu0 0.0
        %398 = vmatpush1.msra.mxu0 0.0
        %399 = vmatprep.subr.mxu0 0.0
        %400 = vmatpush1.msra.mxu0 0.0
        %401 = vmatprep.mubr.f32.mxu0 0.0
        %402 = vmatmul.mubr.f32.gmra.mrb[0].mxu0 %v335
        %v403 = vpop.f32.mrb[0].mxu0
        %v404 = vadd.f32 0.0, %v403
        %v405 = vpop.f32.mrb[0].mxu0
        %v406 = vadd.f32 0.0, %v405
        %407 = vdwg.mxu0
        %v408 = vmul.f32 %v404, 0.17677669
        %409 = vst.msk [vmem:[%s279] sm:$0xff] %vm296, %v408
        %411 = vrot.lane.b32.xlu0 %v404, 64
        %v412 = vpop.permute.xlu0 %411
        %414 = vst.msk [vmem:[%s286] sm:$0xff] %vm296, %v412
        %415 = vst.msk [vmem:[%s293] sm:$0xff] %vm296, %v406
        %s416 = sand.u32 %s119, 1
        %s417 = scalar_lea.sflag [#allocation4], %s416
        %s418 = sand.u32 %s119, 1
        %s419 = smul.addr %s418, 8
        %s420 = scalar_lea.vmem [#allocation7], %s419
        %s421 = sand.u32 %s27, 1
        %s422 = scalar_lea.sflag [#allocation9], %s421
        %s423 = sand.u32 %s147, 1
        %s424 = smul.addr %s423, 8
        %s425 = scalar_lea.vmem [#allocation8], %s424
        %s426 = sand.u32 %s27, 1
        %s427 = scalar_lea.sflag [#allocation9], %s426
        %s428 = sand.u32 %s175, 1
        %s429 = smul.addr %s428, 8
        %s430 = scalar_lea.vmem [#allocation10], %s429
        // Predicated region
        $region41: #{tpu_custom_call.1} parent=31 // pred_check
          %p431 = pneg %p129
        $region42: #{tpu_custom_call.1} parent=31 // pred_check_branch
          %433 = sbr.rel (%p431) target = $region44
        $region43: #{tpu_custom_call.1} parent=31 // pred_region
          %s435 = ssub.s32 128, 128
          %436 = vsyncadd %s417, %s435
          %s437 = sadd.s32 %s32, %s31
          %s438 = smul.addr %s437, 128
          %s439 = scalar_lea.hbm %s3, %s438
          %s441 = sshll.u32 %s420, 4
          %s442 = int_to_ptr.vmem [resolvable:$true] %s441
          %444 = dma.vmem_to_hbm [thread:$0]  %s442, 128, %s439, %s417
        $region44: #{tpu_custom_call.1} parent=31 // pred_fallthru
          _
        // Predicated region
        $region45: #{tpu_custom_call.1} parent=31 // pred_check
          %p445 = pneg %p157
        $region46: #{tpu_custom_call.1} parent=31 // pred_check_branch
          %447 = sbr.rel (%p445) target = $region48
        $region47: #{tpu_custom_call.1} parent=31 // pred_region
          %s449 = ssub.s32 128, 128
          %450 = vsyncadd %s422, %s449
          %s451 = sadd.s32 %s32, %s31
          %s452 = smul.addr %s451, 128
          %s453 = scalar_lea.hbm %s4, %s452
          %s455 = sshll.u32 %s425, 4
          %s456 = int_to_ptr.vmem [resolvable:$true] %s455
          %458 = dma.vmem_to_hbm [thread:$0]  %s456, 128, %s453, %s422
        $region48: #{tpu_custom_call.1} parent=31 // pred_fallthru
          _
        // Predicated region
        $region49: #{tpu_custom_call.1} parent=31 // pred_check
          %p459 = pneg %p185
        $region50: #{tpu_custom_call.1} parent=31 // pred_check_branch
          %461 = sbr.rel (%p459) target = $region52
        $region51: #{tpu_custom_call.1} parent=31 // pred_region
          %s463 = ssub.s32 128, 128
          %464 = vsyncadd %s427, %s463
          %s465 = sadd.s32 %s32, %s31
          %s466 = smul.addr %s465, 128
          %s467 = scalar_lea.hbm %s5, %s466
          %s469 = sshll.u32 %s430, 4
          %s470 = int_to_ptr.vmem [resolvable:$true] %s469
          %472 = dma.vmem_to_hbm [thread:$0]  %s470, 128, %s467, %s427
        $region52: #{tpu_custom_call.1} parent=31 // pred_fallthru
          _
      $region32: #{tpu_custom_call.1} parent=5 // pred_fallthru
        _
      %p473 = scmp.le.s32.totalorder 2, %s22
      // Predicated region
      $region53: #{tpu_custom_call.1} parent=5 // pred_check
        %p474 = pneg %p473
      $region54: #{tpu_custom_call.1} parent=5 // pred_check_branch
        %476 = sbr.rel (%p474) target = $region56
      $region55: #{tpu_custom_call.1} parent=5 // pred_region
        %s477 = ssub.s32 %s22, 2
        // Predicated region
        $region57: #{tpu_custom_call.1} parent=55 // pred_check
          %p478 = pneg %p135
        $region58: #{tpu_custom_call.1} parent=55 // pred_check_branch
          %480 = sbr.rel (%p478) target = $region60
        $region59: #{tpu_custom_call.1} parent=55 // pred_region
          %s481 = sand.u32 %s120, 1
          %s482 = scalar_lea.sflag [#allocation4], %s481
          %s483 = sand.u32 %s120, 1
          %s484 = smul.addr %s483, 8
          %s485 = scalar_lea.vmem [#allocation7], %s484
          %486 = dma.done %s482, 128
        $region60: #{tpu_custom_call.1} parent=55 // pred_fallthru
          _
        // Predicated region
        $region61: #{tpu_custom_call.1} parent=55 // pred_check
          %p487 = pneg %p163
        $region62: #{tpu_custom_call.1} parent=55 // pred_check_branch
          %489 = sbr.rel (%p487) target = $region64
        $region63: #{tpu_custom_call.1} parent=55 // pred_region
          %s490 = sand.u32 %s28, 1
          %s491 = scalar_lea.sflag [#allocation9], %s490
          %s492 = sand.u32 %s148, 1
          %s493 = smul.addr %s492, 8
          %s494 = scalar_lea.vmem [#allocation8], %s493
          %495 = dma.done %s491, 128
        $region64: #{tpu_custom_call.1} parent=55 // pred_fallthru
          _
        // Predicated region
        $region65: #{tpu_custom_call.1} parent=55 // pred_check
          %p496 = pneg %p191
        $region66: #{tpu_custom_call.1} parent=55 // pred_check_branch
          %498 = sbr.rel (%p496) target = $region68
        $region67: #{tpu_custom_call.1} parent=55 // pred_region
          %s499 = sand.u32 %s28, 1
          %s500 = scalar_lea.sflag [#allocation9], %s499
          %s501 = sand.u32 %s176, 1
          %s502 = smul.addr %s501, 8
          %s503 = scalar_lea.vmem [#allocation10], %s502
          %504 = dma.done %s500, 128
        $region68: #{tpu_custom_call.1} parent=55 // pred_fallthru
          _
      $region56: #{tpu_custom_call.1} parent=5 // pred_fallthru
        _
    $region6: #{tpu_custom_call.1} parent=1 // loop_footer
      %s26 = sadd.s32 1, %s22
    $region7: #{tpu_custom_call.1} parent=1 // loop_footer_branch
      %21 = sbr.rel target = $region3
    $region8: #{tpu_custom_call.1} parent=1 // loop_exit
      _
    %505 = vsyncpa [#allocation3], 1
    %s506 = scalar_lea.sflag [#allocation3], 1
    %507 = vsyncpa %s506, 1
    %508 = vsyncpa [#allocation6], 1
    %509 = vsyncpa [#allocation4], 1
    %s510 = scalar_lea.sflag [#allocation4], 1
    %511 = vsyncpa %s510, 1
    %512 = vsyncpa [#allocation9], 1
    %s513 = scalar_lea.sflag [#allocation9], 1
    %514 = vsyncpa %s513, 1

</llo_original>
